<compile_context>
chip_gen: v7x
topology: tpu7x:2x2x1
jax: 0.10.0
libtpu: 0.0.40
codegen_flags: <defaults>
</compile_context>

<pallas_src>
import functools
import math

import jax
import jax.numpy as jnp
from jax import lax
from jax.experimental import pallas as pl
from jax.experimental.pallas import tpu as pltpu


def _mixture_loss_kernel(src_ref, dst_ref, yhc_ref, yhr_ref, yr_ref,   # inputs
                         out_ref,                                      # output
                         sin_acc, err_acc, imb_acc,                    # scratch
                         *, num_nodes, num_edges, alfa, beta, gama,
                         use_huber, delta, mean_reduction):
    step = pl.program_id(0)

    @pl.when(step == 0)
    def _init():
        sin_acc[...] = jnp.zeros_like(sin_acc)
        err_acc[...] = jnp.zeros_like(err_acc)
        imb_acc[...] = jnp.zeros_like(imb_acc)

    # ---- lane-dense elementwise partial sums over this edge tile -----------
    yh_row = yhr_ref[...]                          # (1, TE) f32
    y_row = yr_ref[...]                            # (1, TE) f32

    s = jnp.sin(jnp.float32(math.pi) * yh_row)     # EUP
    sin_acc[...] += s * s                          # VPU add, no reduction here

    d = yh_row - y_row
    if use_huber:
        ad = jnp.abs(d)
        q = jnp.minimum(ad, jnp.float32(delta))
        # huber(d) = 0.5*q^2 + delta*(|d| - q)
        err_acc[...] += 0.5 * q * q + jnp.float32(delta) * (ad - q)
    else:
        err_acc[...] += d * d

    # ---- flow imbalance: nodes on lanes, edge tile on sublanes -------------
    te = src_ref.shape[0]
    n_pad = imb_acc.shape[1]
    node_ids = lax.broadcasted_iota(jnp.int32, (te, n_pad), 1)   # (TE, N_pad)
    src = src_ref[...]                             # (TE, 1) i32
    dst = dst_ref[...]                             # (TE, 1) i32
    yh_col = yhc_ref[...]                          # (TE, 1) f32
    zero = jnp.float32(0.0)
    contrib = (jnp.where(dst == node_ids, yh_col, zero)
               - jnp.where(src == node_ids, yh_col, zero))       # (TE, N_pad)
    # Sublane (axis=0) reduce into a lane-dense accumulator (exact f32).
    # For large N_pad, replace with an MXU dot:
    #   imb_acc[...] += jnp.dot(yh_row, inc, preferred_element_type=jnp.float32)
    imb_acc[...] += jnp.sum(contrib, axis=0, keepdims=True)      # (1, N_pad)

    # ---- finalize on the last tile: single scalar store ---------------------
    @pl.when(step == pl.num_programs(0) - 1)
    def _finalize():
        inv_e = 1.0 / float(num_edges)
        inv_n = 1.0 / float(num_nodes)

        sin_sum = jnp.sum(sin_acc[...])            # one XLU reduce, once
        err_sum = jnp.sum(err_acc[...])
        imb = imb_acc[...]
        imb_sq_sum = jnp.sum(imb * imb)            # padded node slots are zero

        ip = sin_sum * inv_e if mean_reduction else sin_sum
        fl = imb_sq_sum * inv_n if mean_reduction else imb_sq_sum
        if use_huber:
            rl = err_sum * inv_e                   # HuberLoss(reduction='mean')
        else:
            rl = jnp.sqrt(err_sum * inv_e)         # RMSELoss(reduction='mean')

        total = gama * ip + beta * rl + alfa * fl
        out_ref[...] = jnp.reshape(total, (1, 1))


def mixture_loss(edge_index, y_hat, y, *, num_nodes,
                 alfa=1.0, beta=1.0, gama=0.0,
                 reduction="mean", base_loss="rmse", delta=1.0,
                 edge_tile=512):
    """Pallas implementation of MixtureLoss.forward."""
    if base_loss not in ("rmse", "huber"):
        raise ValueError(f"Unexpected loss {base_loss}")
    if reduction not in ("mean", "sum"):
        raise ValueError(f"Unexpected reduction {reduction}")

    e = int(y_hat.shape[-1])

    # Tile size: multiple of 128 (lane-dense rows), clamped to avoid over-pad.
    te = max(128, (int(edge_tile) // 128) * 128)
    e_ceil128 = ((e + 127) // 128) * 128
    te = min(te, e_ceil128)
    e_pad = ((e + te - 1) // te) * te
    pad = e_pad - e

    src = edge_index[0].astype(jnp.int32).reshape(-1)
    dst = edge_index[1].astype(jnp.int32).reshape(-1)
    yh = y_hat.astype(jnp.float32).reshape(-1)
    yt = y.astype(jnp.float32).reshape(-1)
    if pad:
        # Padded edges: src=dst=0, y_hat=y=0 -> zero contribution to all terms.
        src = jnp.pad(src, (0, pad))
        dst = jnp.pad(dst, (0, pad))
        yh = jnp.pad(yh, (0, pad))
        yt = jnp.pad(yt, (0, pad))

    n_pad = max(128, ((int(num_nodes) + 127) // 128) * 128)

    src_col = src.reshape(e_pad, 1)
    dst_col = dst.reshape(e_pad, 1)
    yh_col = yh.reshape(e_pad, 1)
    yh_row = yh.reshape(1, e_pad)
    yt_row = yt.reshape(1, e_pad)

    kernel = functools.partial(
        _mixture_loss_kernel,
        num_nodes=int(num_nodes), num_edges=e,
        alfa=float(alfa), beta=float(beta), gama=float(gama),
        use_huber=(base_loss == "huber"), delta=float(delta),
        mean_reduction=(reduction == "mean"))

    out = pl.pallas_call(
        kernel,
        out_shape=jax.ShapeDtypeStruct((1, 1), jnp.float32),
        grid_spec=pltpu.PrefetchScalarGridSpec(
            num_scalar_prefetch=0,
            grid=(e_pad // te,),
            in_specs=[
                pl.BlockSpec((te, 1), lambda i: (i, 0)),   # src column
                pl.BlockSpec((te, 1), lambda i: (i, 0)),   # dst column
                pl.BlockSpec((te, 1), lambda i: (i, 0)),   # y_hat column
                pl.BlockSpec((1, te), lambda i: (0, i)),   # y_hat row (lane-dense)
                pl.BlockSpec((1, te), lambda i: (0, i)),   # y row (lane-dense)
            ],
            out_specs=pl.BlockSpec((1, 1), lambda i: (0, 0)),
            scratch_shapes=[
                pltpu.VMEM((1, te), jnp.float32),     # sin^2 partials (lane-dense)
                pltpu.VMEM((1, te), jnp.float32),     # error partials (lane-dense)
                pltpu.VMEM((1, n_pad), jnp.float32),  # per-node imbalance
            ]),
        compiler_params=pltpu.CompilerParams(
            dimension_semantics=("arbitrary",)),   # edge axis carries accumulators
    )(src_col, dst_col, yh_col, yh_row, yt_row)
    return out[0, 0]


def _reference(edge_index, y_hat, y, *, num_nodes, alfa, beta, gama,
               reduction="mean", base_loss="rmse", delta=1.0):
    """Pure-JAX reference mirroring the assumed PyTorch semantics."""
    y_hat = y_hat.astype(jnp.float32)
    y = y.astype(jnp.float32)
    red = jnp.mean if reduction == "mean" else jnp.sum

    ip = red(jnp.sin(jnp.pi * y_hat) ** 2)

    src, dst = edge_index[0], edge_index[1]
    inflow = jnp.zeros((num_nodes,), jnp.float32).at[dst].add(y_hat)
    outflow = jnp.zeros((num_nodes,), jnp.float32).at[src].add(y_hat)
    fl = red((inflow - outflow) ** 2)

    d = y_hat - y
    if base_loss == "rmse":
        rl = jnp.sqrt(jnp.mean(d ** 2))
    else:
        ad = jnp.abs(d)
        rl = jnp.mean(jnp.where(ad <= delta, 0.5 * d ** 2,
                                delta * (ad - 0.5 * delta)))
    return gama * ip + beta * rl + alfa * fl


if __name__ == "__main__":
    # Small synthetic graph: 8 nodes, 256 edges (edge_tile=128 -> 2 grid steps
    # so the accumulate / finalize path is exercised).
    num_nodes = 8
    num_edges = 256
    alfa, beta, gama = 1.0, 1.0, 0.5

    key = jax.random.PRNGKey(0)
    k_src, k_dst, k_yhat, k_y = jax.random.split(key, 4)
    src = jax.random.randint(k_src, (num_edges,), 0, num_nodes, dtype=jnp.int32)
    dst = jax.random.randint(k_dst, (num_edges,), 0, num_nodes, dtype=jnp.int32)
    edge_index = jnp.stack([src, dst], axis=0)                 # (2, E)
    y_hat = jax.random.normal(k_yhat, (num_edges,), jnp.float32)
    y = jax.random.normal(k_y, (num_edges,), jnp.float32)

    # rmse base loss (module default)
    loss = mixture_loss(edge_index, y_hat, y, num_nodes=num_nodes,
                        alfa=alfa, beta=beta, gama=gama, edge_tile=128)
    loss = jax.block_until_ready(loss)
    ref = _reference(edge_index, y_hat, y, num_nodes=num_nodes,
                     alfa=alfa, beta=beta, gama=gama)
    assert jnp.allclose(loss, ref, rtol=1e-5, atol=1e-5), (loss, ref)

    # huber base loss branch
    loss_h = mixture_loss(edge_index, y_hat, y, num_nodes=num_nodes,
                          alfa=alfa, beta=beta, gama=gama,
                          base_loss="huber", delta=0.7, edge_tile=128)
    loss_h = jax.block_until_ready(loss_h)
    ref_h = _reference(edge_index, y_hat, y, num_nodes=num_nodes,
                       alfa=alfa, beta=beta, gama=gama,
                       base_loss="huber", delta=0.7)
    assert jnp.allclose(loss_h, ref_h, rtol=1e-5, atol=1e-5), (loss_h, ref_h)

    print("KERNEL_OK")
</pallas_src>

<mosaic_0001>
module attributes {stable_mosaic.version = 11 : i64} {
  func.func @_mixture_loss_kernel(%arg0: i32, %arg1: memref<128x1xi32, #tpu.memory_space<vmem>>, %arg2: memref<128x1xi32, #tpu.memory_space<vmem>>, %arg3: memref<128x1xf32, #tpu.memory_space<vmem>>, %arg4: memref<1x128xf32, #tpu.memory_space<vmem>>, %arg5: memref<1x128xf32, #tpu.memory_space<vmem>>, %arg6: memref<1x1xf32, #tpu.memory_space<vmem>>, %arg7: memref<1x128xf32, #tpu.memory_space<vmem>>, %arg8: memref<1x128xf32, #tpu.memory_space<vmem>>, %arg9: memref<1x128xf32, #tpu.memory_space<vmem>>) attributes {dimension_semantics = [#tpu.dimension_semantics<arbitrary>], iteration_bounds = array<i64: 2>, scalar_prefetch = 0 : i64, scratch_operands = 3 : i64, tpu.core_type = #tpu.core_type<tc>, window_params = [{transform_indices = @transform_0, window_bounds = array<i64: 128, 1>}, {transform_indices = @transform_1, window_bounds = array<i64: 128, 1>}, {transform_indices = @transform_2, window_bounds = array<i64: 128, 1>}, {transform_indices = @transform_3, window_bounds = array<i64: 1, 128>}, {transform_indices = @transform_4, window_bounds = array<i64: 1, 128>}, {pipeline_mode = #tpu.pipeline_mode<synchronous>, transform_indices = @transform_5, window_bounds = array<i64: 1, 1>}]} {
    %c0_i32 = arith.constant 0 : i32
    %0 = arith.cmpi eq, %arg0, %c0_i32 : i32
    %1 = arith.extui %0 : i1 to i32
    %c0_i32_0 = arith.constant 0 : i32
    %2 = arith.cmpi ne, %1, %c0_i32_0 : i32
    scf.if %2 {
      %cst_26 = arith.constant 0.000000e+00 : f32
      %42 = vector.broadcast %cst_26 : f32 to vector<1x128xf32>
      %c0_27 = arith.constant 0 : index
      %c0_28 = arith.constant 0 : index
      %43 = vector.load %arg7[%c0_27, %c0_28] : memref<1x128xf32, #tpu.memory_space<vmem>>, vector<1x128xf32>
      tpu.vector_store %arg7[%c0_27, %c0_28], %42 {strides = array<i32>} : memref<1x128xf32, #tpu.memory_space<vmem>>, vector<1x128xf32>,
      %cst_29 = arith.constant 0.000000e+00 : f32
      %44 = vector.broadcast %cst_29 : f32 to vector<1x128xf32>
      %c0_30 = arith.constant 0 : index
      %c0_31 = arith.constant 0 : index
      %45 = vector.load %arg8[%c0_30, %c0_31] : memref<1x128xf32, #tpu.memory_space<vmem>>, vector<1x128xf32>
      tpu.vector_store %arg8[%c0_30, %c0_31], %44 {strides = array<i32>} : memref<1x128xf32, #tpu.memory_space<vmem>>, vector<1x128xf32>,
      %cst_32 = arith.constant 0.000000e+00 : f32
      %46 = vector.broadcast %cst_32 : f32 to vector<1x128xf32>
      %c0_33 = arith.constant 0 : index
      %c0_34 = arith.constant 0 : index
      %47 = vector.load %arg9[%c0_33, %c0_34] : memref<1x128xf32, #tpu.memory_space<vmem>>, vector<1x128xf32>
      tpu.vector_store %arg9[%c0_33, %c0_34], %46 {strides = array<i32>} : memref<1x128xf32, #tpu.memory_space<vmem>>, vector<1x128xf32>,
    } else {
    }
    %c0 = arith.constant 0 : index
    %c0_1 = arith.constant 0 : index
    %3 = vector.load %arg4[%c0, %c0_1] : memref<1x128xf32, #tpu.memory_space<vmem>>, vector<1x128xf32>
    %c0_2 = arith.constant 0 : index
    %c0_3 = arith.constant 0 : index
    %4 = vector.load %arg5[%c0_2, %c0_3] : memref<1x128xf32, #tpu.memory_space<vmem>>, vector<1x128xf32>
    %cst = arith.constant 3.14159274 : f32
    %5 = vector.broadcast %cst : f32 to vector<1x128xf32>
    %6 = arith.mulf %5, %3 : vector<1x128xf32>
    %7 = math.sin %6 : vector<1x128xf32>
    %c0_4 = arith.constant 0 : index
    %c0_5 = arith.constant 0 : index
    %8 = vector.load %arg7[%c0_4, %c0_5] : memref<1x128xf32, #tpu.memory_space<vmem>>, vector<1x128xf32>
    %9 = arith.mulf %7, %7 : vector<1x128xf32>
    %10 = arith.addf %8, %9 : vector<1x128xf32>
    %c0_6 = arith.constant 0 : index
    %c0_7 = arith.constant 0 : index
    %11 = vector.load %arg7[%c0_6, %c0_7] : memref<1x128xf32, #tpu.memory_space<vmem>>, vector<1x128xf32>
    tpu.vector_store %arg7[%c0_6, %c0_7], %10 {strides = array<i32>} : memref<1x128xf32, #tpu.memory_space<vmem>>, vector<1x128xf32>,
    %12 = arith.subf %3, %4 : vector<1x128xf32>
    %c0_8 = arith.constant 0 : index
    %c0_9 = arith.constant 0 : index
    %13 = vector.load %arg8[%c0_8, %c0_9] : memref<1x128xf32, #tpu.memory_space<vmem>>, vector<1x128xf32>
    %14 = arith.mulf %12, %12 : vector<1x128xf32>
    %15 = arith.addf %13, %14 : vector<1x128xf32>
    %c0_10 = arith.constant 0 : index
    %c0_11 = arith.constant 0 : index
    %16 = vector.load %arg8[%c0_10, %c0_11] : memref<1x128xf32, #tpu.memory_space<vmem>>, vector<1x128xf32>
    tpu.vector_store %arg8[%c0_10, %c0_11], %15 {strides = array<i32>} : memref<1x128xf32, #tpu.memory_space<vmem>>, vector<1x128xf32>,
    %17 = tpu.iota {dimensions = array<i32: 1>} : vector<128x128xi32>
    %c0_12 = arith.constant 0 : index
    %c0_13 = arith.constant 0 : index
    %18 = vector.load %arg1[%c0_12, %c0_13] : memref<128x1xi32, #tpu.memory_space<vmem>>, vector<128x1xi32>
    %c0_14 = arith.constant 0 : index
    %c0_15 = arith.constant 0 : index
    %19 = vector.load %arg2[%c0_14, %c0_15] : memref<128x1xi32, #tpu.memory_space<vmem>>, vector<128x1xi32>
    %c0_16 = arith.constant 0 : index
    %c0_17 = arith.constant 0 : index
    %20 = vector.load %arg3[%c0_16, %c0_17] : memref<128x1xf32, #tpu.memory_space<vmem>>, vector<128x1xf32>
    %21 = vector.broadcast %19 : vector<128x1xi32> to vector<128x128xi32>
    %22 = arith.cmpi eq, %21, %17 : vector<128x128xi32>
    %cst_18 = arith.constant 0.000000e+00 : f32
    %23 = vector.shape_cast %20 : vector<128x1xf32> to vector<128x1xf32>
    %24 = vector.broadcast %23 : vector<128x1xf32> to vector<128x128xf32>
    %25 = vector.broadcast %cst_18 : f32 to vector<128x128xf32>
    %26 = arith.select %22, %24, %25 : vector<128x128xi1>, vector<128x128xf32>
    %27 = vector.broadcast %18 : vector<128x1xi32> to vector<128x128xi32>
    %28 = arith.cmpi eq, %27, %17 : vector<128x128xi32>
    %cst_19 = arith.constant 0.000000e+00 : f32
    %29 = vector.shape_cast %20 : vector<128x1xf32> to vector<128x1xf32>
    %30 = vector.broadcast %29 : vector<128x1xf32> to vector<128x128xf32>
    %31 = vector.broadcast %cst_19 : f32 to vector<128x128xf32>
    %32 = arith.select %28, %30, %31 : vector<128x128xi1>, vector<128x128xf32>
    %33 = arith.subf %26, %32 : vector<128x128xf32>
    %c0_20 = arith.constant 0 : index
    %c0_21 = arith.constant 0 : index
    %34 = vector.load %arg9[%c0_20, %c0_21] : memref<1x128xf32, #tpu.memory_space<vmem>>, vector<1x128xf32>
    %cst_22 = arith.constant dense<0.000000e+00> : vector<128xf32>
    %35 = vector.multi_reduction <add>, %33, %cst_22 [0] : vector<128x128xf32> to vector<128xf32>
    %36 = vector.shape_cast %35 : vector<128xf32> to vector<1x128xf32>
    %37 = arith.addf %34, %36 : vector<1x128xf32>
    %c0_23 = arith.constant 0 : index
    %c0_24 = arith.constant 0 : index
    %38 = vector.load %arg9[%c0_23, %c0_24] : memref<1x128xf32, #tpu.memory_space<vmem>>, vector<1x128xf32>
    tpu.vector_store %arg9[%c0_23, %c0_24], %37 {strides = array<i32>} : memref<1x128xf32, #tpu.memory_space<vmem>>, vector<1x128xf32>,
    %c1_i32 = arith.constant 1 : i32
    %39 = arith.cmpi eq, %arg0, %c1_i32 : i32
    %40 = arith.extui %39 : i1 to i32
    %c0_i32_25 = arith.constant 0 : i32
    %41 = arith.cmpi ne, %40, %c0_i32_25 : i32
    scf.if %41 {
      %c0_26 = arith.constant 0 : index
      %c0_27 = arith.constant 0 : index
      %42 = vector.load %arg7[%c0_26, %c0_27] : memref<1x128xf32, #tpu.memory_space<vmem>>, vector<1x128xf32>
      %43 = vector.shape_cast %42 : vector<1x128xf32> to vector<1x1x128xf32>
      %cst_28 = arith.constant dense<0.000000e+00> : vector<1xf32>
      %44 = vector.multi_reduction <add>, %43, %cst_28 [1, 2] : vector<1x1x128xf32> to vector<1xf32>
      %45 = vector.shape_cast %44 : vector<1xf32> to vector<1x1x1xf32>
      %46 = vector.extract %45[0, 0, 0] : f32 from vector<1x1x1xf32>
      %c0_29 = arith.constant 0 : index
      %c0_30 = arith.constant 0 : index
      %47 = vector.load %arg8[%c0_29, %c0_30] : memref<1x128xf32, #tpu.memory_space<vmem>>, vector<1x128xf32>
      %48 = vector.shape_cast %47 : vector<1x128xf32> to vector<1x1x128xf32>
      %cst_31 = arith.constant dense<0.000000e+00> : vector<1xf32>
      %49 = vector.multi_reduction <add>, %48, %cst_31 [1, 2] : vector<1x1x128xf32> to vector<1xf32>
      %50 = vector.shape_cast %49 : vector<1xf32> to vector<1x1x1xf32>
      %51 = vector.extract %50[0, 0, 0] : f32 from vector<1x1x1xf32>
      %c0_32 = arith.constant 0 : index
      %c0_33 = arith.constant 0 : index
      %52 = vector.load %arg9[%c0_32, %c0_33] : memref<1x128xf32, #tpu.memory_space<vmem>>, vector<1x128xf32>
      %53 = arith.mulf %52, %52 : vector<1x128xf32>
      %54 = vector.shape_cast %53 : vector<1x128xf32> to vector<1x1x128xf32>
      %cst_34 = arith.constant dense<0.000000e+00> : vector<1xf32>
      %55 = vector.multi_reduction <add>, %54, %cst_34 [1, 2] : vector<1x1x128xf32> to vector<1xf32>
      %56 = vector.shape_cast %55 : vector<1xf32> to vector<1x1x1xf32>
      %57 = vector.extract %56[0, 0, 0] : f32 from vector<1x1x1xf32>
      %cst_35 = arith.constant 3.906250e-03 : f32
      %58 = arith.mulf %46, %cst_35 : f32
      %cst_36 = arith.constant 1.250000e-01 : f32
      %59 = arith.mulf %57, %cst_36 : f32
      %cst_37 = arith.constant 3.906250e-03 : f32
      %60 = arith.mulf %51, %cst_37 : f32
      %61 = math.sqrt %60 : f32
      %cst_38 = arith.constant 5.000000e-01 : f32
      %62 = arith.mulf %cst_38, %58 : f32
      %cst_39 = arith.constant 1.000000e+00 : f32
      %63 = arith.mulf %cst_39, %61 : f32
      %64 = arith.addf %62, %63 : f32
      %cst_40 = arith.constant 1.000000e+00 : f32
      %65 = arith.mulf %cst_40, %59 : f32
      %66 = arith.addf %64, %65 : f32
      %67 = vector.broadcast %66 : f32 to vector<1x1xf32>
      %c0_41 = arith.constant 0 : index
      %c0_42 = arith.constant 0 : index
      %68 = vector.load %arg6[%c0_41, %c0_42] : memref<1x1xf32, #tpu.memory_space<vmem>>, vector<1x1xf32>
      tpu.vector_store %arg6[%c0_41, %c0_42], %67 {strides = array<i32>} : memref<1x1xf32, #tpu.memory_space<vmem>>, vector<1x1xf32>,
    } else {
    }
    return
  }
  func.func @transform_0(%arg0: i32) -> (i32, i32) {
    %c0_i32 = arith.constant 0 : i32
    %c0_i32_0 = arith.constant 0 : i32
    return %arg0, %c0_i32 : i32, i32
  }
  func.func @transform_1(%arg0: i32) -> (i32, i32) {
    %c0_i32 = arith.constant 0 : i32
    %c0_i32_0 = arith.constant 0 : i32
    return %arg0, %c0_i32 : i32, i32
  }
  func.func @transform_2(%arg0: i32) -> (i32, i32) {
    %c0_i32 = arith.constant 0 : i32
    %c0_i32_0 = arith.constant 0 : i32
    return %arg0, %c0_i32 : i32, i32
  }
  func.func @transform_3(%arg0: i32) -> (i32, i32) {
    %c0_i32 = arith.constant 0 : i32
    %c0_i32_0 = arith.constant 0 : i32
    return %c0_i32, %arg0 : i32, i32
  }
  func.func @transform_4(%arg0: i32) -> (i32, i32) {
    %c0_i32 = arith.constant 0 : i32
    %c0_i32_0 = arith.constant 0 : i32
    return %c0_i32, %arg0 : i32, i32
  }
  func.func @transform_5(%arg0: i32) -> (i32, i32) {
    %c0_i32 = arith.constant 0 : i32
    %c0_i32_0 = arith.constant 0 : i32
    %c0_i32_1 = arith.constant 0 : i32
    return %c0_i32, %c0_i32_0 : i32, i32
  }
}

</mosaic_0001>

<llo_original>
// kernel: tpu_custom_call.1
$region0: #{tpu_custom_call.1}
  #allocation0 [shape = 'u32[]', space=smem, size = 0x4, offset = 0x4, fixed_abs, tag = 'smem constant byte address 0x4 - core index']
  #allocation1 [shape = 'u32[144,128]{1,0:T(1,128)}', space=vmem, size = 0x12000, scoped, tag = 'internal scratch']
  #allocation2 [shape = 'f32[1,128]{1,0:T(1,128)}', space=vmem, size = 0x200, scoped, tag = 'scratch operand']
  #allocation3 [shape = 'f32[1,128]{1,0:T(1,128)}', space=vmem, size = 0x200, scoped, tag = 'scratch operand']
  #allocation4 [shape = 'f32[1,128]{1,0:T(1,128)}', space=vmem, size = 0x200, scoped, tag = 'scratch operand']
  %s0 = inlined_call_operand.vmem [shape: s32[256,1], index: 0, kind: input, shape index: {}]
  %s1 = inlined_call_operand.vmem [shape: s32[256,1], index: 1, kind: input, shape index: {}]
  %s2 = inlined_call_operand.vmem [shape: f32[256,1], index: 2, kind: input, shape index: {}]
  %s3 = inlined_call_operand.vmem [shape: f32[1,256], index: 3, kind: input, shape index: {}]
  %s4 = inlined_call_operand.vmem [shape: f32[1,256], index: 4, kind: input, shape index: {}]
  %s5 = inlined_call_operand.hbm [shape: f32[1,1], index: 5, kind: output, shape index: {}]
  %s6 = sld [smem:[#allocation0]]
  $region61: #{tpu_custom_call.1} parent=0
    _
  %s8 = ssub.s32 1, %s6
  %s9 = scalar_select 0, %s8, %s6
  $region1: #{tpu_custom_call.1} parent=0
    #allocation5 [shape = 'u8[512]{0}', space=vmem, size = 0x400, scoped, tag = 'output window, operand 0, single buffered']
    #allocation6 [shape = 's32[2]{0}', space=sflag, size = 0x8, scoped, tag = 'scoped memory for tpu_custom_call.1']
    %10 = vsyncpa [#allocation6], 0
    loop: start=0, step=1, limit=4
    $region2: #{tpu_custom_call.1} parent=1 // loop_pre_header
      _
    $region3: #{tpu_custom_call.1} parent=1 // loop_header
      %s12 = sphi 0, %s16
      %p13 = scmp.ge.s32.totalorder %s12, 4
      %s22 = sphi 0, %s24
      %s25 = sphi 0, %s22
      %s26 = sphi 0, %s25
      %s42 = sphi 0, %s26
      %s48 = sphi 0, %s50
      %s51 = sphi 0, %s48
      %s52 = sphi 0, %s51
      %s68 = sphi 0, %s52
      %s74 = sphi 0, %s76
      %s77 = sphi 0, %s74
      %s78 = sphi 0, %s77
      %s94 = sphi 0, %s78
      %s100 = sphi 0, %s102
      %s103 = sphi 0, %s100
      %s104 = sphi 0, %s103
      %s120 = sphi 0, %s104
      %s126 = sphi 0, %s128
      %s129 = sphi 0, %s126
      %s130 = sphi 0, %s129
      %s146 = sphi 0, %s130
      %s150 = sphi 0, %s150
      %s152 = sphi 0, %s150
      %s153 = sphi 0, %s152
      %s167 = sphi 0, %s153
    $region4: #{tpu_custom_call.1} parent=1 // loop_header_branch
      %15 = sbr.rel (%p13) target = $region8
    $region5: #{tpu_custom_call.1} parent=1 // loop_body
      %s17 = ssub.s32 %s12, 1
      %s18 = ssub.s32 %s12, 2
      %s19 = sadd.s32 %s12, 1
      %s20 = ssub.s32 %s12, %s19
      %p21 = scmp.eq.s32.totalorder %s20, 0
      %s23 = sadd.s32 %s22, 1
      %s24 = scalar_select %p21, %s22, %s23
      %p27 = pneg %p21
      %p28 = scmp.eq.s32.totalorder %s12, 1
      %p29 = por %p27, %p28
      %p30 = scmp.ne.s32.totalorder %s22, %s25
      %p31 = scmp.eq.s32.totalorder %s12, 0
      %p32 = por %p30, %p31
      %p33 = scmp.ne.s32.totalorder %s22, %s25
      %p34 = scmp.eq.s32.totalorder %s17, 1
      %p35 = por %p33, %p34
      %p36 = scmp.ne.s32.totalorder %s25, %s26
      %p37 = scmp.eq.s32.totalorder %s17, 0
      %p38 = por %p36, %p37
      %p39 = scmp.ne.s32.totalorder %s25, %s26
      %p40 = scmp.eq.s32.totalorder %s18, 1
      %p41 = por %p39, %p40
      %p43 = scmp.ne.s32.totalorder %s26, %s42
      %p44 = scmp.eq.s32.totalorder %s18, 0
      %p45 = por %p43, %p44
      %s46 = ssub.s32 %s12, %s19
      %p47 = scmp.eq.s32.totalorder %s46, 0
      %s49 = sadd.s32 %s48, 1
      %s50 = scalar_select %p47, %s48, %s49
      %p53 = pneg %p47
      %p54 = scmp.eq.s32.totalorder %s12, 1
      %p55 = por %p53, %p54
      %p56 = scmp.ne.s32.totalorder %s48, %s51
      %p57 = scmp.eq.s32.totalorder %s12, 0
      %p58 = por %p56, %p57
      %p59 = scmp.ne.s32.totalorder %s48, %s51
      %p60 = scmp.eq.s32.totalorder %s17, 1
      %p61 = por %p59, %p60
      %p62 = scmp.ne.s32.totalorder %s51, %s52
      %p63 = scmp.eq.s32.totalorder %s17, 0
      %p64 = por %p62, %p63
      %p65 = scmp.ne.s32.totalorder %s51, %s52
      %p66 = scmp.eq.s32.totalorder %s18, 1
      %p67 = por %p65, %p66
      %p69 = scmp.ne.s32.totalorder %s52, %s68
      %p70 = scmp.eq.s32.totalorder %s18, 0
      %p71 = por %p69, %p70
      %s72 = ssub.s32 %s12, %s19
      %p73 = scmp.eq.s32.totalorder %s72, 0
      %s75 = sadd.s32 %s74, 1
      %s76 = scalar_select %p73, %s74, %s75
      %p79 = pneg %p73
      %p80 = scmp.eq.s32.totalorder %s12, 1
      %p81 = por %p79, %p80
      %p82 = scmp.ne.s32.totalorder %s74, %s77
      %p83 = scmp.eq.s32.totalorder %s12, 0
      %p84 = por %p82, %p83
      %p85 = scmp.ne.s32.totalorder %s74, %s77
      %p86 = scmp.eq.s32.totalorder %s17, 1
      %p87 = por %p85, %p86
      %p88 = scmp.ne.s32.totalorder %s77, %s78
      %p89 = scmp.eq.s32.totalorder %s17, 0
      %p90 = por %p88, %p89
      %p91 = scmp.ne.s32.totalorder %s77, %s78
      %p92 = scmp.eq.s32.totalorder %s18, 1
      %p93 = por %p91, %p92
      %p95 = scmp.ne.s32.totalorder %s78, %s94
      %p96 = scmp.eq.s32.totalorder %s18, 0
      %p97 = por %p95, %p96
      %s98 = ssub.s32 %s12, %s19
      %p99 = scmp.eq.s32.totalorder %s98, 0
      %s101 = sadd.s32 %s100, 1
      %s102 = scalar_select %p99, %s100, %s101
      %p105 = pneg %p99
      %p106 = scmp.eq.s32.totalorder %s12, 1
      %p107 = por %p105, %p106
      %p108 = scmp.ne.s32.totalorder %s100, %s103
      %p109 = scmp.eq.s32.totalorder %s12, 0
      %p110 = por %p108, %p109
      %p111 = scmp.ne.s32.totalorder %s100, %s103
      %p112 = scmp.eq.s32.totalorder %s17, 1
      %p113 = por %p111, %p112
      %p114 = scmp.ne.s32.totalorder %s103, %s104
      %p115 = scmp.eq.s32.totalorder %s17, 0
      %p116 = por %p114, %p115
      %p117 = scmp.ne.s32.totalorder %s103, %s104
      %p118 = scmp.eq.s32.totalorder %s18, 1
      %p119 = por %p117, %p118
      %p121 = scmp.ne.s32.totalorder %s104, %s120
      %p122 = scmp.eq.s32.totalorder %s18, 0
      %p123 = por %p121, %p122
      %s124 = ssub.s32 %s12, %s19
      %p125 = scmp.eq.s32.totalorder %s124, 0
      %s127 = sadd.s32 %s126, 1
      %s128 = scalar_select %p125, %s126, %s127
      %p131 = pneg %p125
      %p132 = scmp.eq.s32.totalorder %s12, 1
      %p133 = por %p131, %p132
      %p134 = scmp.ne.s32.totalorder %s126, %s129
      %p135 = scmp.eq.s32.totalorder %s12, 0
      %p136 = por %p134, %p135
      %p137 = scmp.ne.s32.totalorder %s126, %s129
      %p138 = scmp.eq.s32.totalorder %s17, 1
      %p139 = por %p137, %p138
      %p140 = scmp.ne.s32.totalorder %s129, %s130
      %p141 = scmp.eq.s32.totalorder %s17, 0
      %p142 = por %p140, %p141
      %p143 = scmp.ne.s32.totalorder %s129, %s130
      %p144 = scmp.eq.s32.totalorder %s18, 1
      %p145 = por %p143, %p144
      %p147 = scmp.ne.s32.totalorder %s130, %s146
      %p148 = scmp.eq.s32.totalorder %s18, 0
      %p149 = por %p147, %p148
      %s151 = sadd.s32 %s150, 1
      %p154 = scmp.eq.s32.totalorder %s12, 1
      %p155 = scmp.ne.s32.totalorder %s150, %s152
      %p156 = scmp.eq.s32.totalorder %s12, 0
      %p157 = por %p155, %p156
      %p158 = scmp.ne.s32.totalorder %s150, %s152
      %p159 = scmp.eq.s32.totalorder %s17, 1
      %p160 = por %p158, %p159
      %p161 = scmp.ne.s32.totalorder %s152, %s153
      %p162 = scmp.eq.s32.totalorder %s17, 0
      %p163 = por %p161, %p162
      %p164 = scmp.ne.s32.totalorder %s152, %s153
      %p165 = scmp.eq.s32.totalorder %s18, 1
      %p166 = por %p164, %p165
      %p168 = scmp.ne.s32.totalorder %s153, %s167
      %p169 = scmp.eq.s32.totalorder %s18, 0
      %p170 = por %p168, %p169
      %p171 = scmp.le.s32.totalorder 1, %s12
      %p172 = scmp.lt.s32.totalorder %s12, 3
      %p173 = pnand %p171, %p172
      %p174 = pneg %p173
      // Predicated region
      $region9: #{tpu_custom_call.1} parent=5 // pred_check
        _
      $region10: #{tpu_custom_call.1} parent=5 // pred_check_branch
        %176 = sbr.rel (%p173) target = $region12
      $region11: #{tpu_custom_call.1} parent=5 // pred_region
        %s177 = ssub.s32 %s12, 1
      $region12: #{tpu_custom_call.1} parent=5 // pred_fallthru
        _
      %p178 = scmp.lt.s32.totalorder %s12, 2
      // Predicated region
      $region13: #{tpu_custom_call.1} parent=5 // pred_check
        %p179 = pneg %p178
      $region14: #{tpu_custom_call.1} parent=5 // pred_check_branch
        %181 = sbr.rel (%p179) target = $region16
      $region15: #{tpu_custom_call.1} parent=5 // pred_region
        // Predicated region
        $region17: #{tpu_custom_call.1} parent=15 // pred_check
          %p182 = pneg %p32
        $region18: #{tpu_custom_call.1} parent=15 // pred_check_branch
          %184 = sbr.rel (%p182) target = $region20
        $region19: #{tpu_custom_call.1} parent=15 // pred_region
          %s185 = smul.u32 16, %s12
          %p186 = scmp.lt.s32.totalorder %s185, 31
          %s187 = scalar_select %p186, %s185, 31
          %s188 = smul.addr %s187, 8
          %s189 = scalar_lea.vmem %s0, %s188
          %s190 = smul.u32 16, %s12
        $region20: #{tpu_custom_call.1} parent=15 // pred_fallthru
          _
        // Predicated region
        $region21: #{tpu_custom_call.1} parent=15 // pred_check
          %p191 = pneg %p58
        $region22: #{tpu_custom_call.1} parent=15 // pred_check_branch
          %193 = sbr.rel (%p191) target = $region24
        $region23: #{tpu_custom_call.1} parent=15 // pred_region
          %s194 = smul.u32 16, %s12
          %p195 = scmp.lt.s32.totalorder %s194, 31
          %s196 = scalar_select %p195, %s194, 31
          %s197 = smul.addr %s196, 8
          %s198 = scalar_lea.vmem %s1, %s197
          %s199 = smul.u32 16, %s12
        $region24: #{tpu_custom_call.1} parent=15 // pred_fallthru
          _
        // Predicated region
        $region25: #{tpu_custom_call.1} parent=15 // pred_check
          %p200 = pneg %p84
        $region26: #{tpu_custom_call.1} parent=15 // pred_check_branch
          %202 = sbr.rel (%p200) target = $region28
        $region27: #{tpu_custom_call.1} parent=15 // pred_region
          %s203 = smul.u32 16, %s12
          %p204 = scmp.lt.s32.totalorder %s203, 31
          %s205 = scalar_select %p204, %s203, 31
          %s206 = smul.addr %s205, 8
          %s207 = scalar_lea.vmem %s2, %s206
          %s208 = smul.u32 16, %s12
        $region28: #{tpu_custom_call.1} parent=15 // pred_fallthru
          _
        // Predicated region
        $region29: #{tpu_custom_call.1} parent=15 // pred_check
          %p209 = pneg %p110
        $region30: #{tpu_custom_call.1} parent=15 // pred_check_branch
          %211 = sbr.rel (%p209) target = $region32
        $region31: #{tpu_custom_call.1} parent=15 // pred_region
          %p212 = scmp.lt.s32.totalorder %s12, 1
          %s213 = scalar_select %p212, %s12, 1
          %s214 = scalar_lea.vmem %s3, %s213
        $region32: #{tpu_custom_call.1} parent=15 // pred_fallthru
          _
        // Predicated region
        $region33: #{tpu_custom_call.1} parent=15 // pred_check
          %p215 = pneg %p136
        $region34: #{tpu_custom_call.1} parent=15 // pred_check_branch
          %217 = sbr.rel (%p215) target = $region36
        $region35: #{tpu_custom_call.1} parent=15 // pred_region
          %p218 = scmp.lt.s32.totalorder %s12, 1
          %s219 = scalar_select %p218, %s12, 1
          %s220 = scalar_lea.vmem %s4, %s219
        $region36: #{tpu_custom_call.1} parent=15 // pred_fallthru
          _
      $region16: #{tpu_custom_call.1} parent=5 // pred_fallthru
        _
      %p221 = scmp.le.s32.totalorder 1, %s12
      %p222 = scmp.lt.s32.totalorder %s12, 3
      %p223 = pnand %p221, %p222
      %p224 = pneg %p223
      // Predicated region
      $region37: #{tpu_custom_call.1} parent=5 // pred_check
        _
      $region38: #{tpu_custom_call.1} parent=5 // pred_check_branch
        %226 = sbr.rel (%p223) target = $region40
      $region39: #{tpu_custom_call.1} parent=5 // pred_region
        %s227 = ssub.s32 %s12, 1
        %s228 = smul.u32 16, %s17
        %p229 = scmp.lt.s32.totalorder %s228, 31
        %s230 = scalar_select %p229, %s228, 31
        %s231 = smul.addr %s230, 8
        %s232 = scalar_lea.vmem %s0, %s231
        %p233 = pneg %p38
        %p234 = pneg %p35
        %s235 = smul.u32 16, %s17
        %p236 = scmp.lt.s32.totalorder %s235, 31
        %s237 = scalar_select %p236, %s235, 31
        %s238 = smul.addr %s237, 8
        %s239 = scalar_lea.vmem %s1, %s238
        %p240 = pneg %p64
        %p241 = pneg %p61
        %s242 = smul.u32 16, %s17
        %p243 = scmp.lt.s32.totalorder %s242, 31
        %s244 = scalar_select %p243, %s242, 31
        %s245 = smul.addr %s244, 8
        %s246 = scalar_lea.vmem %s2, %s245
        %p247 = pneg %p90
        %p248 = pneg %p87
        %p249 = scmp.lt.s32.totalorder %s17, 1
        %s250 = scalar_select %p249, %s17, 1
        %s251 = scalar_lea.vmem %s3, %s250
        %p252 = pneg %p116
        %p253 = pneg %p113
        %p254 = scmp.lt.s32.totalorder %s17, 1
        %s255 = scalar_select %p254, %s17, 1
        %s256 = scalar_lea.vmem %s4, %s255
        %p257 = pneg %p142
        %p258 = pneg %p139
        %p259 = pneg %p163
        %p260 = pneg %p160
        %s261 = smul.u32 16, %s17
        %p262 = scmp.lt.s32.totalorder %s261, 31
        %s263 = scalar_select %p262, %s261, 31
        %s264 = smul.addr %s263, 8
        %s265 = scalar_lea.vmem %s0, %s264
        %s266 = smul.u32 16, %s17
        %s267 = smul.u32 16, %s17
        %p268 = scmp.lt.s32.totalorder %s267, 31
        %s269 = scalar_select %p268, %s267, 31
        %s270 = smul.addr %s269, 8
        %s271 = scalar_lea.vmem %s1, %s270
        %s272 = smul.u32 16, %s17
        %s273 = smul.u32 16, %s17
        %p274 = scmp.lt.s32.totalorder %s273, 31
        %s275 = scalar_select %p274, %s273, 31
        %s276 = smul.addr %s275, 8
        %s277 = scalar_lea.vmem %s2, %s276
        %s278 = smul.u32 16, %s17
        %p279 = scmp.lt.s32.totalorder %s17, 1
        %s280 = scalar_select %p279, %s17, 1
        %s281 = scalar_lea.vmem %s3, %s280
        %p282 = scmp.lt.s32.totalorder %s17, 1
        %s283 = scalar_select %p282, %s17, 1
        %s284 = scalar_lea.vmem %s4, %s283
        %p285 = scmp.eq.s32.totalorder %s17, 0
        // Predicated region
        $region41: #{tpu_custom_call.1} parent=39 // pred_check
          %p286 = pneg %p285
        $region42: #{tpu_custom_call.1} parent=39 // pred_check_branch
          %288 = sbr.rel (%p286) target = $region44
        $region43: #{tpu_custom_call.1} parent=39 // pred_region
          %289 = vst [vmem:[#allocation2] sm:$0x1] 0.0
          %290 = vst [vmem:[#allocation3] sm:$0x1] 0.0
          %291 = vst [vmem:[#allocation4] sm:$0x1] 0.0
        $region44: #{tpu_custom_call.1} parent=39 // pred_fallthru
          _
        %v292 = vld [vmem:[%s281] sm:$0x1]
        %v293 = vld [vmem:[%s284] sm:$0x1]
        %v294 = vmul.f32 %v292, 3.1415927
        %v295 = vand.u32 2147483647, %v294
        %vm296 = vcmp.le.f32.partialorder %v295, 0.7853982
        %vm297 = vcmp.lt.s32.totalorder %v294, 0
        %v298 = vand.u32 %v294, 2139095040
        %v299 = vshrl.u32 %v298, 23
        %v300 = vsub.s32 %v299, 127
        %v301 = vand.u32 2147483647, %v294
        %v302 = vand.u32 %v301, 8388607
        %v303 = vor.u32 %v302, 8388608
        %v304 = vsub.s32 0, %v303
        %v305 = vadd.s32 %v300, 1
        %vm306 = vcmp.gt.s32.totalorder %v305, 0
        %v307 = vsel %vm306, %v305, 0
        %v308 = vshrl.u32 %v307, 5
        %v309 = vand.u32 %v307, 31
        %v310 = vsub.s32 32, %v309
        %v311 = vshrl.u32 683565275, %v310
        %v312 = vshll.u32 683565275, %v309
        %v313 = vshrl.u32 2475754826, %v310
        %v314 = vor.u32 %v312, %v313
        %v315 = vshll.u32 2475754826, %v309
        %v316 = vshrl.u32 2131351028, %v310
        %v317 = vor.u32 %v315, %v316
        %v318 = vshll.u32 2131351028, %v309
        %v319 = vshrl.u32 2102212464, %v310
        %v320 = vor.u32 %v318, %v319
        %v321 = vshll.u32 2102212464, %v309
        %v322 = vshrl.u32 920167782, %v310
        %v323 = vor.u32 %v321, %v322
        %v324 = vshll.u32 920167782, %v309
        %v325 = vshrl.u32 1326507024, %v310
        %v326 = vor.u32 %v324, %v325
        %vm327 = vcmp.lt.s32.totalorder %v308, 1
        %vm328 = vcmp.lt.s32.totalorder %v308, 2
        %vm329 = vcmp.lt.s32.totalorder %v308, 3
        %vm330 = vcmp.lt.s32.totalorder %v308, 4
        %v331 = vsel %vm327, %v311, %v314
        %v332 = vsel %vm330, %v320, 2102212464
        %v333 = vsel %vm329, %v317, %v332
        %v334 = vsel %vm328, %v331, %v333
        %v335 = vsel %vm327, %v314, %v317
        %v336 = vsel %vm330, %v323, 920167782
        %v337 = vsel %vm329, %v320, %v336
        %v338 = vsel %vm328, %v335, %v337
        %v339 = vsel %vm327, %v317, %v320
        %v340 = vsel %vm330, %v326, 1326507024
        %v341 = vsel %vm329, %v323, %v340
        %v342 = vsel %vm328, %v339, %v341
        %v343 = vshll.u32 %v303, 8
        %v344 = vmul.u32.u64.compose %v343, %v342
        %v345 = vextract.low.u32 %v344
        %v346 = vextract.high.u32 %v344
        %v347 = vmul.u32.u64.compose %v343, %v338
        %v348 = vextract.low.u32 %v347
        %v349 = vextract.high.u32 %v347
        %v350 = vmul.u32 %v343, %v334
        %v351 = vadd.s32 %v346, %v348
        %vm352 = vc.u32 %v346, %v348
        %v353 = vadd.s32 %v349, 1
        %v354 = vsel %vm352, %v353, %v349
        %v355 = vadd.s32 %v350, %v354
        %v356 = vadd.s32 %v355, 536870912
        %v357 = vshrl.u32 %v356, 30
        %v358 = vshll.u32 %v357, 30
        %v359 = vsub.s32 %v355, %v358
        %vm360 = vcmp.lt.s32.totalorder %v359, 0
        %v361 = vsub.s32 0, %v359
        %v362 = vsel %vm360, %v361, %v359
        %v363 = vclz %v362
        %v364 = vsub.s32 %v363, 2
        %vm365 = vcmp.gt.s32.totalorder 0, %v364
        %v366 = vsel %vm365, 0, %v364
        %v367 = vsub.s32 32, %v366
        %v368 = vshll.u32 %v359, %v366
        %v369 = vshrl.u32 %v351, %v367
        %v370 = vor.u32 %v368, %v369
        %v371 = vsub.s32 4294967266, %v366
        %v372 = vadd.s32 %v371, 127
        %v373 = vshll.u32 %v372, 23
        %v374 = vor.u32 4788187, %v373
        %v375 = vand.u32 2147483647, %v374
        %v377 = vcvt.s32.f32 %v370
        %v378 = vmul.f32 %v377, %v375
        %v379 = vxor.u32 %v378, 2147483648
        %v380 = vsel %vm297, %v379, %v378
        %v381 = vsub.s32 4, %v357
        %v382 = vsel %vm297, %v381, %v357
        %v383 = vsel %vm296, %v294, %v380
        %v384 = vsel %vm296, 0, %v382
        %v385 = vcosq.f32.pop %v383
        %v386 = vsinq.f32.pop %v383
        %vm387 = vweird.f32 %v294
        %v388 = vadd.s32 %v384, 3
        %v389 = vand.u32 %v388, 3
        %vm390 = vcmp.lt.s32.totalorder %v389, 2
        %vm391 = vcmp.eq.s32.totalorder %v389, 0
        %v392 = vxor.u32 %v386, 2147483648
        %v393 = vsel %vm391, %v385, %v392
        %vm394 = vcmp.eq.s32.totalorder %v389, 2
        %v395 = vxor.u32 %v385, 2147483648
        %v396 = vsel %vm394, %v395, %v386
        %v397 = vsel %vm390, %v393, %v396
        %v398 = vsel %vm387, nan, %v397
        %v399 = vld [vmem:[#allocation2] sm:$0x1]
        %v400 = vmul.f32 %v398, %v398
        %v401 = vadd.f32 %v399, %v400
        %402 = vst [vmem:[#allocation2] sm:$0x1] %v401
        %v403 = vsub.f32 %v292, %v293
        %v404 = vld [vmem:[#allocation3] sm:$0x1]
        %v405 = vmul.f32 %v403, %v403
        %v406 = vadd.f32 %v404, %v405
        %407 = vst [vmem:[#allocation3] sm:$0x1] %v406
        %v408 = vlaneseq
        %v409 = vand.u32 %v408, 127
        %v410 = vld [vmem:[%s265] sm:$0xff]
        %v411 = vld [vmem:[%s265 + $0x8] sm:$0xff]
        %v412 = vld [vmem:[%s265 + $0x10] sm:$0xff]
        %v413 = vld [vmem:[%s265 + $0x18] sm:$0xff]
        %v414 = vld [vmem:[%s265 + $0x20] sm:$0xff]
        %v415 = vld [vmem:[%s265 + $0x28] sm:$0xff]
        %v416 = vld [vmem:[%s265 + $0x30] sm:$0xff]
        %v417 = vld [vmem:[%s265 + $0x38] sm:$0xff]
        %v418 = vld [vmem:[%s265 + $0x40] sm:$0xff]
        %v419 = vld [vmem:[%s265 + $0x48] sm:$0xff]
        %v420 = vld [vmem:[%s265 + $0x50] sm:$0xff]
        %v421 = vld [vmem:[%s265 + $0x58] sm:$0xff]
        %v422 = vld [vmem:[%s265 + $0x60] sm:$0xff]
        %v423 = vld [vmem:[%s265 + $0x68] sm:$0xff]
        %v424 = vld [vmem:[%s265 + $0x70] sm:$0xff]
        %v425 = vld [vmem:[%s265 + $0x78] sm:$0xff]
        %v426 = vld [vmem:[%s271] sm:$0xff]
        %v427 = vld [vmem:[%s271 + $0x8] sm:$0xff]
        %v428 = vld [vmem:[%s271 + $0x10] sm:$0xff]
        %v429 = vld [vmem:[%s271 + $0x18] sm:$0xff]
        %v430 = vld [vmem:[%s271 + $0x20] sm:$0xff]
        %v431 = vld [vmem:[%s271 + $0x28] sm:$0xff]
        %v432 = vld [vmem:[%s271 + $0x30] sm:$0xff]
        %v433 = vld [vmem:[%s271 + $0x38] sm:$0xff]
        %v434 = vld [vmem:[%s271 + $0x40] sm:$0xff]
        %v435 = vld [vmem:[%s271 + $0x48] sm:$0xff]
        %v436 = vld [vmem:[%s271 + $0x50] sm:$0xff]
        %v437 = vld [vmem:[%s271 + $0x58] sm:$0xff]
        %v438 = vld [vmem:[%s271 + $0x60] sm:$0xff]
        %v439 = vld [vmem:[%s271 + $0x68] sm:$0xff]
        %v440 = vld [vmem:[%s271 + $0x70] sm:$0xff]
        %v441 = vld [vmem:[%s271 + $0x78] sm:$0xff]
        %v442 = vld [vmem:[%s277] sm:$0xff]
        %v443 = vld [vmem:[%s277 + $0x8] sm:$0xff]
        %v444 = vld [vmem:[%s277 + $0x10] sm:$0xff]
        %v445 = vld [vmem:[%s277 + $0x18] sm:$0xff]
        %v446 = vld [vmem:[%s277 + $0x20] sm:$0xff]
        %v447 = vld [vmem:[%s277 + $0x28] sm:$0xff]
        %v448 = vld [vmem:[%s277 + $0x30] sm:$0xff]
        %v449 = vld [vmem:[%s277 + $0x38] sm:$0xff]
        %v450 = vld [vmem:[%s277 + $0x40] sm:$0xff]
        %v451 = vld [vmem:[%s277 + $0x48] sm:$0xff]
        %v452 = vld [vmem:[%s277 + $0x50] sm:$0xff]
        %v453 = vld [vmem:[%s277 + $0x58] sm:$0xff]
        %v454 = vld [vmem:[%s277 + $0x60] sm:$0xff]
        %v455 = vld [vmem:[%s277 + $0x68] sm:$0xff]
        %v456 = vld [vmem:[%s277 + $0x70] sm:$0xff]
        %v457 = vld [vmem:[%s277 + $0x78] sm:$0xff]
        %458 = vset.pattern.permute.xlu0 0
        %459 = vperm.xlu0 %458, %v426
        %v460 = vpop.permute.xlu0 %459
        %461 = vset.pattern.permute.xlu0 0
        %462 = vperm.xlu0 %461, %v427
        %v463 = vpop.permute.xlu0 %462
        %464 = vset.pattern.permute.xlu0 0
        %465 = vperm.xlu0 %464, %v428
        %v466 = vpop.permute.xlu0 %465
        %467 = vset.pattern.permute.xlu0 0
        %468 = vperm.xlu0 %467, %v429
        %v469 = vpop.permute.xlu0 %468
        %470 = vset.pattern.permute.xlu0 0
        %471 = vperm.xlu0 %470, %v430
        %v472 = vpop.permute.xlu0 %471
        %473 = vset.pattern.permute.xlu0 0
        %474 = vperm.xlu0 %473, %v431
        %v475 = vpop.permute.xlu0 %474
        %476 = vset.pattern.permute.xlu0 0
        %477 = vperm.xlu0 %476, %v432
        %v478 = vpop.permute.xlu0 %477
        %479 = vset.pattern.permute.xlu0 0
        %480 = vperm.xlu0 %479, %v433
        %v481 = vpop.permute.xlu0 %480
        %482 = vset.pattern.permute.xlu0 0
        %483 = vperm.xlu0 %482, %v434
        %v484 = vpop.permute.xlu0 %483
        %485 = vset.pattern.permute.xlu0 0
        %486 = vperm.xlu0 %485, %v435
        %v487 = vpop.permute.xlu0 %486
        %488 = vset.pattern.permute.xlu0 0
        %489 = vperm.xlu0 %488, %v436
        %v490 = vpop.permute.xlu0 %489
        %491 = vset.pattern.permute.xlu0 0
        %492 = vperm.xlu0 %491, %v437
        %v493 = vpop.permute.xlu0 %492
        %494 = vset.pattern.permute.xlu0 0
        %495 = vperm.xlu0 %494, %v438
        %v496 = vpop.permute.xlu0 %495
        %497 = vset.pattern.permute.xlu0 0
        %498 = vperm.xlu0 %497, %v439
        %v499 = vpop.permute.xlu0 %498
        %500 = vset.pattern.permute.xlu0 0
        %501 = vperm.xlu0 %500, %v440
        %v502 = vpop.permute.xlu0 %501
        %503 = vset.pattern.permute.xlu0 0
        %504 = vperm.xlu0 %503, %v441
        %v505 = vpop.permute.xlu0 %504
        %vm506 = vcmp.eq.s32.totalorder %v460, %v409
        %vm507 = vcmp.eq.s32.totalorder %v463, %v409
        %vm508 = vcmp.eq.s32.totalorder %v466, %v409
        %vm509 = vcmp.eq.s32.totalorder %v469, %v409
        %vm510 = vcmp.eq.s32.totalorder %v472, %v409
        %vm511 = vcmp.eq.s32.totalorder %v475, %v409
        %vm512 = vcmp.eq.s32.totalorder %v478, %v409
        %vm513 = vcmp.eq.s32.totalorder %v481, %v409
        %vm514 = vcmp.eq.s32.totalorder %v484, %v409
        %vm515 = vcmp.eq.s32.totalorder %v487, %v409
        %vm516 = vcmp.eq.s32.totalorder %v490, %v409
        %vm517 = vcmp.eq.s32.totalorder %v493, %v409
        %vm518 = vcmp.eq.s32.totalorder %v496, %v409
        %vm519 = vcmp.eq.s32.totalorder %v499, %v409
        %vm520 = vcmp.eq.s32.totalorder %v502, %v409
        %vm521 = vcmp.eq.s32.totalorder %v505, %v409
        %523 = vset.pattern.permute.xlu0 0
        %524 = vperm.xlu0 %523, %v442
        %v525 = vpop.permute.xlu0 %524
        %528 = vset.pattern.permute.xlu0 0
        %529 = vperm.xlu0 %528, %v443
        %v530 = vpop.permute.xlu0 %529
        %533 = vset.pattern.permute.xlu0 0
        %534 = vperm.xlu0 %533, %v444
        %v535 = vpop.permute.xlu0 %534
        %538 = vset.pattern.permute.xlu0 0
        %539 = vperm.xlu0 %538, %v445
        %v540 = vpop.permute.xlu0 %539
        %543 = vset.pattern.permute.xlu0 0
        %544 = vperm.xlu0 %543, %v446
        %v545 = vpop.permute.xlu0 %544
        %548 = vset.pattern.permute.xlu0 0
        %549 = vperm.xlu0 %548, %v447
        %v550 = vpop.permute.xlu0 %549
        %553 = vset.pattern.permute.xlu0 0
        %554 = vperm.xlu0 %553, %v448
        %v555 = vpop.permute.xlu0 %554
        %558 = vset.pattern.permute.xlu0 0
        %559 = vperm.xlu0 %558, %v449
        %v560 = vpop.permute.xlu0 %559
        %563 = vset.pattern.permute.xlu0 0
        %564 = vperm.xlu0 %563, %v450
        %v565 = vpop.permute.xlu0 %564
        %568 = vset.pattern.permute.xlu0 0
        %569 = vperm.xlu0 %568, %v451
        %v570 = vpop.permute.xlu0 %569
        %573 = vset.pattern.permute.xlu0 0
        %574 = vperm.xlu0 %573, %v452
        %v575 = vpop.permute.xlu0 %574
        %578 = vset.pattern.permute.xlu0 0
        %579 = vperm.xlu0 %578, %v453
        %v580 = vpop.permute.xlu0 %579
        %583 = vset.pattern.permute.xlu0 0
        %584 = vperm.xlu0 %583, %v454
        %v585 = vpop.permute.xlu0 %584
        %588 = vset.pattern.permute.xlu0 0
        %589 = vperm.xlu0 %588, %v455
        %v590 = vpop.permute.xlu0 %589
        %593 = vset.pattern.permute.xlu0 0
        %594 = vperm.xlu0 %593, %v456
        %v595 = vpop.permute.xlu0 %594
        %598 = vset.pattern.permute.xlu0 0
        %599 = vperm.xlu0 %598, %v457
        %v600 = vpop.permute.xlu0 %599
        %v602 = vsel %vm506, %v525, 0.0
        %v603 = vsel %vm507, %v530, 0.0
        %v604 = vsel %vm508, %v535, 0.0
        %v605 = vsel %vm509, %v540, 0.0
        %v606 = vsel %vm510, %v545, 0.0
        %v607 = vsel %vm511, %v550, 0.0
        %v608 = vsel %vm512, %v555, 0.0
        %v609 = vsel %vm513, %v560, 0.0
        %v610 = vsel %vm514, %v565, 0.0
        %v611 = vsel %vm515, %v570, 0.0
        %v612 = vsel %vm516, %v575, 0.0
        %v613 = vsel %vm517, %v580, 0.0
        %v614 = vsel %vm518, %v585, 0.0
        %v615 = vsel %vm519, %v590, 0.0
        %v616 = vsel %vm520, %v595, 0.0
        %v617 = vsel %vm521, %v600, 0.0
        %618 = vset.pattern.permute.xlu0 0
        %619 = vperm.xlu0 %618, %v410
        %v620 = vpop.permute.xlu0 %619
        %621 = vset.pattern.permute.xlu0 0
        %622 = vperm.xlu0 %621, %v411
        %v623 = vpop.permute.xlu0 %622
        %624 = vset.pattern.permute.xlu0 0
        %625 = vperm.xlu0 %624, %v412
        %v626 = vpop.permute.xlu0 %625
        %627 = vset.pattern.permute.xlu0 0
        %628 = vperm.xlu0 %627, %v413
        %v629 = vpop.permute.xlu0 %628
        %630 = vset.pattern.permute.xlu0 0
        %631 = vperm.xlu0 %630, %v414
        %v632 = vpop.permute.xlu0 %631
        %633 = vset.pattern.permute.xlu0 0
        %634 = vperm.xlu0 %633, %v415
        %v635 = vpop.permute.xlu0 %634
        %636 = vset.pattern.permute.xlu0 0
        %637 = vperm.xlu0 %636, %v416
        %v638 = vpop.permute.xlu0 %637
        %639 = vset.pattern.permute.xlu0 0
        %640 = vperm.xlu0 %639, %v417
        %v641 = vpop.permute.xlu0 %640
        %642 = vset.pattern.permute.xlu0 0
        %643 = vperm.xlu0 %642, %v418
        %v644 = vpop.permute.xlu0 %643
        %645 = vset.pattern.permute.xlu0 0
        %646 = vperm.xlu0 %645, %v419
        %v647 = vpop.permute.xlu0 %646
        %648 = vset.pattern.permute.xlu0 0
        %649 = vperm.xlu0 %648, %v420
        %v650 = vpop.permute.xlu0 %649
        %651 = vset.pattern.permute.xlu0 0
        %652 = vperm.xlu0 %651, %v421
        %v653 = vpop.permute.xlu0 %652
        %654 = vset.pattern.permute.xlu0 0
        %655 = vperm.xlu0 %654, %v422
        %v656 = vpop.permute.xlu0 %655
        %657 = vset.pattern.permute.xlu0 0
        %658 = vperm.xlu0 %657, %v423
        %v659 = vpop.permute.xlu0 %658
        %660 = vset.pattern.permute.xlu0 0
        %661 = vperm.xlu0 %660, %v424
        %v662 = vpop.permute.xlu0 %661
        %663 = vset.pattern.permute.xlu0 0
        %664 = vperm.xlu0 %663, %v425
        %v665 = vpop.permute.xlu0 %664
        %vm666 = vcmp.eq.s32.totalorder %v620, %v409
        %vm667 = vcmp.eq.s32.totalorder %v623, %v409
        %vm668 = vcmp.eq.s32.totalorder %v626, %v409
        %vm669 = vcmp.eq.s32.totalorder %v629, %v409
        %vm670 = vcmp.eq.s32.totalorder %v632, %v409
        %vm671 = vcmp.eq.s32.totalorder %v635, %v409
        %vm672 = vcmp.eq.s32.totalorder %v638, %v409
        %vm673 = vcmp.eq.s32.totalorder %v641, %v409
        %vm674 = vcmp.eq.s32.totalorder %v644, %v409
        %vm675 = vcmp.eq.s32.totalorder %v647, %v409
        %vm676 = vcmp.eq.s32.totalorder %v650, %v409
        %vm677 = vcmp.eq.s32.totalorder %v653, %v409
        %vm678 = vcmp.eq.s32.totalorder %v656, %v409
        %vm679 = vcmp.eq.s32.totalorder %v659, %v409
        %vm680 = vcmp.eq.s32.totalorder %v662, %v409
        %vm681 = vcmp.eq.s32.totalorder %v665, %v409
        %v682 = vsel %vm666, %v525, 0.0
        %v683 = vsel %vm667, %v530, 0.0
        %v684 = vsel %vm668, %v535, 0.0
        %v685 = vsel %vm669, %v540, 0.0
        %v686 = vsel %vm670, %v545, 0.0
        %v687 = vsel %vm671, %v550, 0.0
        %v688 = vsel %vm672, %v555, 0.0
        %v689 = vsel %vm673, %v560, 0.0
        %v690 = vsel %vm674, %v565, 0.0
        %v691 = vsel %vm675, %v570, 0.0
        %v692 = vsel %vm676, %v575, 0.0
        %v693 = vsel %vm677, %v580, 0.0
        %v694 = vsel %vm678, %v585, 0.0
        %v695 = vsel %vm679, %v590, 0.0
        %v696 = vsel %vm680, %v595, 0.0
        %v697 = vsel %vm681, %v600, 0.0
        %v698 = vsub.f32 %v602, %v682
        %v699 = vsub.f32 %v603, %v683
        %v700 = vsub.f32 %v604, %v684
        %v701 = vsub.f32 %v605, %v685
        %v702 = vsub.f32 %v606, %v686
        %v703 = vsub.f32 %v607, %v687
        %v704 = vsub.f32 %v608, %v688
        %v705 = vsub.f32 %v609, %v689
        %v706 = vsub.f32 %v610, %v690
        %v707 = vsub.f32 %v611, %v691
        %v708 = vsub.f32 %v612, %v692
        %v709 = vsub.f32 %v613, %v693
        %v710 = vsub.f32 %v614, %v694
        %v711 = vsub.f32 %v615, %v695
        %v712 = vsub.f32 %v616, %v696
        %v713 = vsub.f32 %v617, %v697
        %v714 = vld [vmem:[#allocation4] sm:$0x1]
        %v715 = vadd.f32 %v698, %v699
        %v716 = vadd.f32 %v715, %v700
        %v717 = vadd.f32 %v716, %v701
        %v718 = vadd.f32 %v717, %v702
        %v719 = vadd.f32 %v718, %v703
        %v720 = vadd.f32 %v719, %v704
        %v721 = vadd.f32 %v720, %v705
        %v722 = vadd.f32 %v721, %v706
        %v723 = vadd.f32 %v722, %v707
        %v724 = vadd.f32 %v723, %v708
        %v725 = vadd.f32 %v724, %v709
        %v726 = vadd.f32 %v725, %v710
        %v727 = vadd.f32 %v726, %v711
        %v728 = vadd.f32 %v727, %v712
        %v729 = vadd.f32 %v728, %v713
        %v730 = vrot.slane %v729, 4
        %v731 = vadd.f32 %v729, %v730
        %v732 = vrot.slane %v731, 2
        %v733 = vadd.f32 %v731, %v732
        %v734 = vrot.slane %v733, 1
        %v735 = vadd.f32 %v733, %v734
        %v736 = vadd.f32 %v714, %v735
        %737 = vst [vmem:[#allocation4] sm:$0x1] %v736
        %p738 = scmp.eq.s32.totalorder %s17, 1
        // Predicated region
        $region45: #{tpu_custom_call.1} parent=39 // pred_check
          %p739 = pneg %p738
        $region46: #{tpu_custom_call.1} parent=39 // pred_check_branch
          %741 = sbr.rel (%p739) target = $region48
        $region47: #{tpu_custom_call.1} parent=39 // pred_region
          %v742 = vld [vmem:[#allocation2] sm:$0x1]
          %vm743 = vcmask 1040384
          %v744 = vsel %vm743, %v742, 0.0
          %745 = vadd.xlane.f32.xlu0 %v744
          %v746 = vpop.xlane.xlu0 %745
          %v747 = vrot.slane %v746, 4
          %v748 = vadd.f32 %v746, %v747
          %v749 = vrot.slane %v748, 2
          %v750 = vadd.f32 %v748, %v749
          %v751 = vrot.slane %v750, 1
          %v752 = vadd.f32 %v750, %v751
          %s753 = vtos %v752
          %v754 = vld [vmem:[#allocation3] sm:$0x1]
          %v755 = vsel %vm743, %v754, 0.0
          %756 = vadd.xlane.f32.xlu0 %v755
          %v757 = vpop.xlane.xlu0 %756
          %v758 = vrot.slane %v757, 4
          %v759 = vadd.f32 %v757, %v758
          %v760 = vrot.slane %v759, 2
          %v761 = vadd.f32 %v759, %v760
          %v762 = vrot.slane %v761, 1
          %v763 = vadd.f32 %v761, %v762
          %s764 = vtos %v763
          %v765 = vld [vmem:[#allocation4] sm:$0x1]
          %v766 = vmul.f32 %v765, %v765
          %v767 = vsel %vm743, %v766, 0.0
          %768 = vadd.xlane.f32.xlu0 %v767
          %v769 = vpop.xlane.xlu0 %768
          %v770 = vrot.slane %v769, 4
          %v771 = vadd.f32 %v769, %v770
          %v772 = vrot.slane %v771, 2
          %v773 = vadd.f32 %v771, %v772
          %v774 = vrot.slane %v773, 1
          %v775 = vadd.f32 %v773, %v774
          %s776 = vtos %v775
          %s777 = smul.f32 %s753, 0.00390625
          %s778 = smul.f32 %s776, 0.125
          %s779 = smul.f32 %s764, 0.00390625
          %v780 = vstv %s779
          %v781 = vrsqrt.pop %v780
          %v782 = vmul.f32 %v780, %v781
          %vm783 = vcmp.eq.f32.partialorder %v780, inf
          %v784 = vsel %vm783, %v780, %v782
          %vm785 = vcmp.eq.f32.partialorder %v780, 0.0
          %v786 = vand.u32 %v780, 2147483648
          %v787 = vsel %vm785, %v786, %v784
          %s788 = vtos %v787
          %s789 = smul.f32 %s777, 0.5
          %s790 = sadd.f32 %s789, %s788
          %s791 = sadd.f32 %s790, %s778
          %v792 = vstv %s791
          %vm793 = vcmask 0
          %794 = vst.msk [vmem:[#allocation5] sm:$0x1] %vm793, %v792
        $region48: #{tpu_custom_call.1} parent=39 // pred_fallthru
          _
        // Predicated region
        $region49: #{tpu_custom_call.1} parent=39 // pred_check
          %p795 = pneg %p160
        $region50: #{tpu_custom_call.1} parent=39 // pred_check_branch
          %797 = sbr.rel (%p795) target = $region52
        $region51: #{tpu_custom_call.1} parent=39 // pred_region
          %s799 = ssub.s32 16, 16
          %800 = vsyncadd [#allocation6], %s799
          %s802 = sshll.u32 [#allocation5], 4
          %s803 = int_to_ptr.vmem [resolvable:$true] %s802
          %805 = dma.vmem_to_hbm [thread:$0]  %s803, 16, %s5, [#allocation6]
        $region52: #{tpu_custom_call.1} parent=39 // pred_fallthru
          _
        // Predicated region
        $region53: #{tpu_custom_call.1} parent=39 // pred_check
          %p806 = pneg %p160
        $region54: #{tpu_custom_call.1} parent=39 // pred_check_branch
          %808 = sbr.rel (%p806) target = $region56
        $region55: #{tpu_custom_call.1} parent=39 // pred_region
          %809 = dma.done [#allocation6], 16
        $region56: #{tpu_custom_call.1} parent=39 // pred_fallthru
          _
      $region40: #{tpu_custom_call.1} parent=5 // pred_fallthru
        _
      %p810 = scmp.le.s32.totalorder 2, %s12
      // Predicated region
      $region57: #{tpu_custom_call.1} parent=5 // pred_check
        %p811 = pneg %p810
      $region58: #{tpu_custom_call.1} parent=5 // pred_check_branch
        %813 = sbr.rel (%p811) target = $region60
      $region59: #{tpu_custom_call.1} parent=5 // pred_region
        %s814 = ssub.s32 %s12, 2
      $region60: #{tpu_custom_call.1} parent=5 // pred_fallthru
        _
    $region6: #{tpu_custom_call.1} parent=1 // loop_footer
      %s16 = sadd.s32 1, %s12
    $region7: #{tpu_custom_call.1} parent=1 // loop_footer_branch
      %11 = sbr.rel target = $region3
    $region8: #{tpu_custom_call.1} parent=1 // loop_exit
      _
    %815 = vsyncpa [#allocation6], 1
    %s816 = scalar_lea.sflag [#allocation6], 1
    %817 = vsyncpa %s816, 1

</llo_original>
